<compile_context>
chip_gen: v7x
topology: tpu7x:2x2x1
jax: 0.10.0
libtpu: 0.0.40
codegen_flags: <defaults>
</compile_context>

<pallas_src>
import functools

import jax
import jax.numpy as jnp
from jax.experimental import pallas as pl
from jax.experimental.pallas import tpu as pltpu

_LANES = 128


def _cdiv(a, b):
    return -(-a // b)


def _chip_budgets():
    """Chip-aware VMEM budgets (no hard-coded 20/32 MiB constants)."""
    phys = 0
    try:
        phys = int(getattr(pltpu.get_tpu_info(), "vmem_capacity_bytes", 0))
    except Exception:
        phys = 0
    if phys >= 128 * 1024 * 1024:
        # v5e / v6e: 128 MiB physical VMEM.
        return {"vmem_limit": 64 * 1024 * 1024,
                "tile_budget": 48 * 1024 * 1024,
                "default_tile_c": 4096}
    # v7x (64 MiB physical) or unknown: stay conservative.
    return {"vmem_limit": 32 * 1024 * 1024,
            "tile_budget": 20 * 1024 * 1024,
            "default_tile_c": 2048}


def _sublane_multiple(dtype):
    # Native sublane packing: 8 rows for 4-byte, 16 for 2-byte, 32 for 1-byte.
    return max(8, 32 // jnp.dtype(dtype).itemsize)


def _pick_tile_n(n, per_row_bytes, sublane_mult, tile_budget,
                 max_tile_n=None, min_tiles=1):
    """Largest batch tile (native sublane multiple, <=1024) fitting the budget.

    min_tiles=2 keeps at least two grid steps so the 'parallel' batch axis can
    shard across v7x's two TensorCores (near-free on single-TC chips).
    """
    tile = tile_budget // max(per_row_bytes, 1)
    tile = int(max(sublane_mult, min(1024, tile)))
    if max_tile_n is not None:
        tile = min(tile, max(int(max_tile_n), 1))
    if min_tiles > 1:
        tile = min(tile, _cdiv(n, min_tiles))
    if tile >= n:
        return int(n)          # full batch dim: no (8,128) divisibility issue
    return max(sublane_mult, (tile // sublane_mult) * sublane_mult)


# ---------------------------------------------------------------------------
# Kernel 1: whole class axis per tile, per-tile partial sum (mean / sum).
# ---------------------------------------------------------------------------
def _ls_ce_partial_kernel(logits_ref, target_ref, out_ref, *, epsilon,
                          num_classes, n_valid, tile_n, mask_rows):
    i = pl.program_id(0)

    x = logits_ref[...].astype(jnp.float32)                    # (tile_n, C)
    t = target_ref[...]                                        # (tile_n, 1) int32

    m = jnp.max(x, axis=-1, keepdims=True)
    shifted = x - m
    lse = jnp.log(jnp.sum(jnp.exp(shifted), axis=-1, keepdims=True))

    # (1, C) iota + broadcasting: no full-tile int32 iota temporary.
    col = jax.lax.broadcasted_iota(jnp.int32, (1, x.shape[1]), 1)
    shifted_t = jnp.sum(jnp.where(col == t, shifted, 0.0), axis=-1, keepdims=True)

    eps = float(epsilon)
    if eps > 0.0:
        c = float(num_classes)
        # TODO(synk): optionally offload this row sum to the idle MXU
        # (dot with a ones matrix) on VALU-bound v6e/v7x.
        sum_shifted = jnp.sum(shifted, axis=-1, keepdims=True)
        per_row = (-(1.0 - eps) * (shifted_t - lse)
                   - (eps / c) * (sum_shifted - c * lse))       # (tile_n, 1)
    else:
        per_row = lse - shifted_t                               # plain CE

    if mask_rows:  # only emitted when the batch is actually ragged
        row = i * tile_n + jax.lax.broadcasted_iota(jnp.int32, (tile_n, 1), 0)
        per_row = jnp.where(row < n_valid, per_row, 0.0)

    # Lane-dense (unmasked full-vreg) partial output.
    out_ref[...] = jnp.full((1, 1, _LANES), jnp.sum(per_row), dtype=jnp.float32)


# ---------------------------------------------------------------------------
# Kernel 2: class axis split with online log-sum-exp (large-vocab path).
# ---------------------------------------------------------------------------
def _ls_ce_partial_split_kernel(logits_ref, target_ref, out_ref, *scratch,
                                epsilon, num_classes, n_valid, tile_n, tile_c,
                                mask_rows):
    eps = float(epsilon)
    if eps > 0.0:
        m_ref, l_ref, tgt_ref, sum_ref = scratch
    else:
        m_ref, l_ref, tgt_ref = scratch
        sum_ref = None

    i = pl.program_id(0)
    j = pl.program_id(1)
    nc = pl.num_programs(1)
    ragged_c = (int(num_classes) % int(tile_c)) != 0

    @pl.when(j == 0)
    def _():
        m_ref[...] = jnp.full_like(m_ref, -jnp.inf)
        l_ref[...] = jnp.zeros_like(l_ref)
        tgt_ref[...] = jnp.zeros_like(tgt_ref)
        if sum_ref is not None:
            sum_ref[...] = jnp.zeros_like(sum_ref)

    def update(masked):
        x = logits_ref[...].astype(jnp.float32)                 # (tile_n, tile_c)
        t = target_ref[...]                                     # (tile_n, 1)
        col = j * tile_c + jax.lax.broadcasted_iota(jnp.int32, (1, tile_c), 1)
        if masked:
            valid = col < num_classes                           # (1, tile_c)
            x_for_max = jnp.where(valid, x, -jnp.inf)
        else:
            x_for_max = x

        # Online log-sum-exp update.
        m_prev = m_ref[...]
        m_new = jnp.maximum(m_prev, jnp.max(x_for_max, axis=-1, keepdims=True))
        alpha = jnp.exp(m_prev - m_new)
        p = jnp.exp(x - m_new)
        if masked:
            p = jnp.where(valid, p, 0.0)
        l_ref[...] = alpha * l_ref[...] + jnp.sum(p, axis=-1, keepdims=True)
        m_ref[...] = m_new

        # Target gather: padded columns can never equal t (< num_classes),
        # so no extra valid mask needed here.
        tgt_ref[...] += jnp.sum(jnp.where(col == t, x, 0.0), axis=-1, keepdims=True)
        if sum_ref is not None:
            xs = jnp.where(valid, x, 0.0) if masked else x
            sum_ref[...] += jnp.sum(xs, axis=-1, keepdims=True)

    if ragged_c:
        # Tail-specialized: interior class tiles run unmasked; only the ragged
        # last class tile pays for iota/compare/select work.
        @pl.when(j < nc - 1)
        def _():
            update(False)

        @pl.when(j == nc - 1)
        def _():
            update(True)
    else:
        update(False)

    @pl.when(j == nc - 1)
    def _():
        lse = m_ref[...] + jnp.log(l_ref[...])                  # (tile_n, 1)
        if sum_ref is not None:
            c = float(num_classes)
            per_row = (-(1.0 - eps) * (tgt_ref[...] - lse)
                       - (eps / c) * (sum_ref[...] - c * lse))
        else:
            per_row = lse - tgt_ref[...]
        if mask_rows:
            row = i * tile_n + jax.lax.broadcasted_iota(jnp.int32, (tile_n, 1), 0)
            per_row = jnp.where(row < n_valid, per_row, 0.0)
        out_ref[...] = jnp.full((1, 1, _LANES), jnp.sum(per_row), dtype=jnp.float32)


# ---------------------------------------------------------------------------
# Kernel 3: per-element loss (PyTorch fall-through, e.g. reduction='none').
# ---------------------------------------------------------------------------
def _ls_ce_none_kernel(logits_ref, target_ref, out_ref, *, epsilon, num_classes):
    x = logits_ref[...].astype(jnp.float32)
    t = target_ref[...]
    m = jnp.max(x, axis=-1, keepdims=True)
    shifted = x - m
    lse = jnp.log(jnp.sum(jnp.exp(shifted), axis=-1, keepdims=True))
    log_probs = shifted - lse
    col = jax.lax.broadcasted_iota(jnp.int32, (1, x.shape[1]), 1)
    eps = float(epsilon)
    if eps > 0.0:
        smooth = eps / float(num_classes)
        loss = -smooth * log_probs - (1.0 - eps) * jnp.where(col == t, log_probs, 0.0)
    else:
        loss = -jnp.where(col == t, log_probs, 0.0)
    out_ref[...] = loss.astype(out_ref.dtype)


# ---------------------------------------------------------------------------
# Wrapper: matches LabelSmoothingCrossEntropy.forward(input, target).
# ---------------------------------------------------------------------------
def label_smoothing_cross_entropy(logits, target, *, num_classes, epsilon,
                                  reduction="mean", max_tile_n=None,
                                  max_tile_c=None, none_out_dtype=None):
    n, c = logits.shape
    assert c == num_classes
    target2d = target.reshape(n, 1).astype(jnp.int32)

    budgets = _chip_budgets()
    tile_budget = budgets["tile_budget"]
    vmem_limit = budgets["vmem_limit"]
    itemsize = jnp.dtype(logits.dtype).itemsize
    sublane = _sublane_multiple(logits.dtype)
    min_tiles = 2 if n >= 2 * sublane else 1
    params1d = pltpu.CompilerParams(dimension_semantics=("parallel",),
                                    vmem_limit_bytes=vmem_limit)

    if reduction in ("avg", "mean", "sum"):
        # Split the class axis when even a minimal-row tile at full C overflows
        # the budget (or the caller forces it).
        use_split = (max_tile_c is not None) or \
            (c * (2 * itemsize + 16) * sublane > tile_budget)

        if not use_split:
            per_row = c * (2 * itemsize + 16)   # dbl-buffered input + f32 temps
            tile_n = _pick_tile_n(n, per_row, sublane, tile_budget,
                                  max_tile_n, min_tiles)
            num_tiles = _cdiv(n, tile_n)
            kernel = functools.partial(
                _ls_ce_partial_kernel, epsilon=float(epsilon),
                num_classes=int(num_classes), n_valid=int(n),
                tile_n=int(tile_n), mask_rows=(n % tile_n != 0))
            partials = pl.pallas_call(
                kernel,
                out_shape=jax.ShapeDtypeStruct((num_tiles, 1, _LANES), jnp.float32),
                grid=(num_tiles,),
                in_specs=[pl.BlockSpec((tile_n, c), lambda i: (i, 0)),
                          pl.BlockSpec((tile_n, 1), lambda i: (i, 0))],
                out_specs=pl.BlockSpec((1, 1, _LANES), lambda i: (i, 0, 0)),
                compiler_params=params1d,
            )(logits, target2d)
        else:
            if max_tile_c is not None:
                tile_c = max(128, (int(max_tile_c) // 128) * 128)
            else:
                tile_c = budgets["default_tile_c"]
            tile_c = min(tile_c, c)
            per_row = tile_c * (2 * itemsize + 16)
            tile_n = _pick_tile_n(n, per_row, sublane, tile_budget,
                                  max_tile_n, min_tiles)
            num_n_tiles = _cdiv(n, tile_n)
            num_c_tiles = _cdiv(c, tile_c)
            kernel = functools.partial(
                _ls_ce_partial_split_kernel, epsilon=float(epsilon),
                num_classes=int(num_classes), n_valid=int(n),
                tile_n=int(tile_n), tile_c=int(tile_c),
                mask_rows=(n % tile_n != 0))
            n_scratch = 4 if float(epsilon) > 0.0 else 3  # sum_ref elided at eps==0
            partials = pl.pallas_call(
                kernel,
                out_shape=jax.ShapeDtypeStruct((num_n_tiles, 1, _LANES), jnp.float32),
                grid=(num_n_tiles, num_c_tiles),
                in_specs=[pl.BlockSpec((tile_n, tile_c), lambda i, j: (i, j)),
                          pl.BlockSpec((tile_n, 1), lambda i, j: (i, 0))],
                out_specs=pl.BlockSpec((1, 1, _LANES), lambda i, j: (i, 0, 0)),
                scratch_shapes=[pltpu.VMEM((tile_n, 1), jnp.float32)] * n_scratch,
                compiler_params=pltpu.CompilerParams(
                    dimension_semantics=("parallel", "arbitrary"),
                    vmem_limit_bytes=vmem_limit),
            )(logits, target2d)

        total = jnp.sum(partials[:, 0, 0])
        if reduction in ("avg", "mean"):
            return total / jnp.float32(n)
        return total

    # PyTorch module fall-through: full (N, C) per-element loss.
    # Output in the input dtype by default (cuts HBM write traffic for bf16).
    out_dtype = jnp.dtype(none_out_dtype) if none_out_dtype is not None \
        else jnp.dtype(logits.dtype)
    # Per-row accounting includes input + output double buffers + f32 temps.
    per_row = c * (2 * itemsize + 2 * out_dtype.itemsize + 20)
    tile_n = _pick_tile_n(n, per_row, sublane, tile_budget, max_tile_n, min_tiles)
    num_tiles = _cdiv(n, tile_n)
    kernel = functools.partial(_ls_ce_none_kernel, epsilon=float(epsilon),
                               num_classes=int(num_classes))
    # Output emitted directly at (n, c): Pallas clips the ragged last block's
    # writeback, so no pad + slice copy (extra N*C HBM round trip) is needed.
    # TODO(synk): very large vocabularies on this path would also need a
    # split-C treatment like kernel 2.
    return pl.pallas_call(
        kernel,
        out_shape=jax.ShapeDtypeStruct((n, c), out_dtype),
        grid=(num_tiles,),
        in_specs=[pl.BlockSpec((tile_n, c), lambda i: (i, 0)),
                  pl.BlockSpec((tile_n, 1), lambda i: (i, 0))],
        out_specs=pl.BlockSpec((tile_n, c), lambda i: (i, 0)),
        compiler_params=params1d,
    )(logits, target2d)


# ---------------------------------------------------------------------------
# Pure-JAX reference mirroring the PyTorch module.
# ---------------------------------------------------------------------------
def _reference(logits, target, num_classes, epsilon, reduction="mean"):
    log_probs = jax.nn.log_softmax(logits.astype(jnp.float32), axis=-1)
    onehot = jax.nn.one_hot(target, num_classes, dtype=jnp.float32)
    if epsilon > 0.0:
        tgt = (1.0 - epsilon) * onehot + epsilon / num_classes
    else:
        tgt = onehot
    loss = -tgt * log_probs
    if reduction in ("avg", "mean"):
        return jnp.mean(jnp.sum(loss, axis=1))
    if reduction == "sum":
        return jnp.sum(loss)
    return loss


if __name__ == "__main__":
    key = jax.random.PRNGKey(0)
    k1, k2, k3, k4 = jax.random.split(key, 4)

    batch = 12          # not a multiple of 8  -> exercises ragged batch tiles
    num_classes = 160   # not a multiple of 128 -> exercises ragged class tiles
    epsilon = 0.1

    logits = jax.random.normal(k1, (batch, num_classes), dtype=jnp.float32) * 3.0
    target = jax.random.randint(k2, (batch,), 0, num_classes, dtype=jnp.int32)

    def check(got, want, tag, tol=1e-5):
        got = jax.block_until_ready(got)
        ok = jnp.allclose(got, want, rtol=tol, atol=tol)
        assert bool(ok), (tag, got, want)

    # 1) mean, single tile (batch + classes fit one block).
    check(label_smoothing_cross_entropy(logits, target, num_classes=num_classes,
                                        epsilon=epsilon, reduction="mean"),
          _reference(logits, target, num_classes, epsilon, "mean"), "mean")

    # 2) mean, tiled batch with a ragged last tile (per-tile partials path).
    check(label_smoothing_cross_entropy(logits, target, num_classes=num_classes,
                                        epsilon=epsilon, reduction="mean",
                                        max_tile_n=8),
          _reference(logits, target, num_classes, epsilon, "mean"), "mean_tiled")

    # 3) sum, split-class online-LSE path (ragged batch + ragged class tiles,
    #    tail-specialized last class tile).
    check(label_smoothing_cross_entropy(logits, target, num_classes=num_classes,
                                        epsilon=epsilon, reduction="sum",
                                        max_tile_n=8, max_tile_c=128),
          _reference(logits, target, num_classes, epsilon, "sum"),
          "sum_split_c", tol=1e-4)

    # 4) sum, split-class path with epsilon == 0 (sum_ref scratch elided).
    check(label_smoothing_cross_entropy(logits, target, num_classes=num_classes,
                                        epsilon=0.0, reduction="sum",
                                        max_tile_n=8, max_tile_c=128),
          _reference(logits, target, num_classes, 0.0, "sum"),
          "sum_split_c_eps0", tol=1e-4)

    # 5) mean, bf16 ingestion (no wrapper-side f32 cast; upcast happens in-kernel).
    logits_bf16 = logits.astype(jnp.bfloat16)
    check(label_smoothing_cross_entropy(logits_bf16, target, num_classes=num_classes,
                                        epsilon=epsilon, reduction="mean"),
          _reference(logits_bf16, target, num_classes, epsilon, "mean"), "mean_bf16")

    # 6) reduction fall-through: per-element (N, C) loss, no pad/slice copy.
    check(label_smoothing_cross_entropy(logits, target, num_classes=num_classes,
                                        epsilon=epsilon, reduction="none",
                                        max_tile_n=8),
          _reference(logits, target, num_classes, epsilon, "none"), "none")

    # 7) larger, evenly-tiled batch (exercises the >=2-tile megacore heuristic).
    logits_big = jax.random.normal(k3, (32, 256), dtype=jnp.float32) * 3.0
    target_big = jax.random.randint(k4, (32,), 0, 256, dtype=jnp.int32)
    check(label_smoothing_cross_entropy(logits_big, target_big, num_classes=256,
                                        epsilon=epsilon, reduction="mean"),
          _reference(logits_big, target_big, 256, epsilon, "mean"), "mean_big")

    print("KERNEL_OK")
</pallas_src>

<mosaic_0001>
module attributes {stable_mosaic.version = 11 : i64} {
  func.func @_ls_ce_partial_kernel(%arg0: i32, %arg1: memref<12x160xf32, #tpu.memory_space<vmem>>, %arg2: memref<12x1xi32, #tpu.memory_space<vmem>>, %arg3: memref<1x1x128xf32, #tpu.memory_space<vmem>>) attributes {dimension_semantics = [#tpu.dimension_semantics<parallel>], iteration_bounds = array<i64: 1>, scalar_prefetch = 0 : i64, scratch_operands = 0 : i64, tpu.core_type = #tpu.core_type<tc>, window_params = [{transform_indices = @transform_0, window_bounds = array<i64: 12, 160>}, {transform_indices = @transform_1, window_bounds = array<i64: 12, 1>}, {transform_indices = @transform_2, window_bounds = array<i64: 1, 1, 128>}]} {
    %c0 = arith.constant 0 : index
    %c0_0 = arith.constant 0 : index
    %0 = vector.load %arg1[%c0, %c0_0] : memref<12x160xf32, #tpu.memory_space<vmem>>, vector<12x160xf32>
    %c0_1 = arith.constant 0 : index
    %c0_2 = arith.constant 0 : index
    %1 = vector.load %arg2[%c0_1, %c0_2] : memref<12x1xi32, #tpu.memory_space<vmem>>, vector<12x1xi32>
    %cst = arith.constant dense<0xFF800000> : vector<12xf32>
    %2 = vector.multi_reduction <maximumf>, %0, %cst [1] : vector<12x160xf32> to vector<12xf32>
    %3 = vector.shape_cast %2 : vector<12xf32> to vector<12x1xf32>
    %4 = vector.broadcast %3 : vector<12x1xf32> to vector<12x160xf32>
    %5 = arith.subf %0, %4 : vector<12x160xf32>
    %6 = math.exp %5 : vector<12x160xf32>
    %cst_3 = arith.constant dense<0.000000e+00> : vector<12xf32>
    %7 = vector.multi_reduction <add>, %6, %cst_3 [1] : vector<12x160xf32> to vector<12xf32>
    %8 = vector.shape_cast %7 : vector<12xf32> to vector<12x1xf32>
    %9 = math.log %8 : vector<12x1xf32>
    %10 = tpu.iota {dimensions = array<i32: 1>} : vector<1x160xi32>
    %11 = vector.broadcast %10 : vector<1x160xi32> to vector<12x160xi32>
    %12 = vector.broadcast %1 : vector<12x1xi32> to vector<12x160xi32>
    %13 = arith.cmpi eq, %11, %12 : vector<12x160xi32>
    %cst_4 = arith.constant 0.000000e+00 : f32
    %14 = vector.broadcast %cst_4 : f32 to vector<12x160xf32>
    %15 = arith.select %13, %5, %14 : vector<12x160xi1>, vector<12x160xf32>
    %cst_5 = arith.constant dense<0.000000e+00> : vector<12xf32>
    %16 = vector.multi_reduction <add>, %15, %cst_5 [1] : vector<12x160xf32> to vector<12xf32>
    %17 = vector.shape_cast %16 : vector<12xf32> to vector<12x1xf32>
    %cst_6 = arith.constant dense<0.000000e+00> : vector<12xf32>
    %18 = vector.multi_reduction <add>, %5, %cst_6 [1] : vector<12x160xf32> to vector<12xf32>
    %19 = vector.shape_cast %18 : vector<12xf32> to vector<12x1xf32>
    %20 = arith.subf %17, %9 : vector<12x1xf32>
    %cst_7 = arith.constant -0.899999976 : f32
    %21 = vector.broadcast %cst_7 : f32 to vector<12x1xf32>
    %22 = arith.mulf %21, %20 : vector<12x1xf32>
    %cst_8 = arith.constant 1.600000e+02 : f32
    %23 = vector.broadcast %cst_8 : f32 to vector<12x1xf32>
    %24 = arith.mulf %23, %9 : vector<12x1xf32>
    %25 = arith.subf %19, %24 : vector<12x1xf32>
    %cst_9 = arith.constant 6.250000e-04 : f32
    %26 = vector.broadcast %cst_9 : f32 to vector<12x1xf32>
    %27 = arith.mulf %26, %25 : vector<12x1xf32>
    %28 = arith.subf %22, %27 : vector<12x1xf32>
    %29 = vector.shape_cast %28 : vector<12x1xf32> to vector<1x12x1xf32>
    %cst_10 = arith.constant dense<0.000000e+00> : vector<1xf32>
    %30 = vector.multi_reduction <add>, %29, %cst_10 [1, 2] : vector<1x12x1xf32> to vector<1xf32>
    %31 = vector.shape_cast %30 : vector<1xf32> to vector<1x1x1xf32>
    %32 = vector.extract %31[0, 0, 0] : f32 from vector<1x1x1xf32>
    %33 = vector.broadcast %32 : f32 to vector<1x1x128xf32>
    %c0_11 = arith.constant 0 : index
    %c0_12 = arith.constant 0 : index
    %c0_13 = arith.constant 0 : index
    %34 = vector.load %arg3[%c0_11, %c0_12, %c0_13] : memref<1x1x128xf32, #tpu.memory_space<vmem>>, vector<1x1x128xf32>
    tpu.vector_store %arg3[%c0_11, %c0_12, %c0_13], %33 {strides = array<i32>} : memref<1x1x128xf32, #tpu.memory_space<vmem>>, vector<1x1x128xf32>,
    return
  }
  func.func @transform_0(%arg0: i32) -> (i32, i32) {
    %c0_i32 = arith.constant 0 : i32
    %c0_i32_0 = arith.constant 0 : i32
    return %arg0, %c0_i32 : i32, i32
  }
  func.func @transform_1(%arg0: i32) -> (i32, i32) {
    %c0_i32 = arith.constant 0 : i32
    %c0_i32_0 = arith.constant 0 : i32
    return %arg0, %c0_i32 : i32, i32
  }
  func.func @transform_2(%arg0: i32) -> (i32, i32, i32) {
    %c0_i32 = arith.constant 0 : i32
    %c0_i32_0 = arith.constant 0 : i32
    %c0_i32_1 = arith.constant 0 : i32
    return %arg0, %c0_i32, %c0_i32_0 : i32, i32, i32
  }
}

</mosaic_0001>

<llo_original>
// kernel: tpu_custom_call.1
$region0: #{tpu_custom_call.1}
  #allocation0 [shape = 'u32[]', space=smem, size = 0x4, offset = 0x4, fixed_abs, tag = 'smem constant byte address 0x4 - core index']
  #allocation1 [shape = 'u32[144,128]{1,0:T(1,128)}', space=vmem, size = 0x12000, scoped, tag = 'internal scratch']
  %s0 = inlined_call_operand.hbm [shape: f32[12,160], index: 0, kind: input, shape index: {}]
  %s1 = inlined_call_operand.vmem [shape: s32[12,1], index: 1, kind: input, shape index: {}]
  %s2 = inlined_call_operand.hbm [shape: f32[1,1,128], index: 2, kind: output, shape index: {}]
  %s3 = sld [smem:[#allocation0]]
  $region22: #{tpu_custom_call.1} parent=0
    _
  %s5 = ssub.s32 1, %s3
  %s6 = scalar_select 0, %s5, %s3
  $region1: #{tpu_custom_call.1} parent=0
    #allocation2 [shape = 'u8[16384]{0}', space=vmem, size = 0x4000, scoped, tag = 'input window, operand 0, single buffered']
    #allocation3 [shape = 's32[1]{0}', space=sflag, size = 0x4, scoped, tag = 'scoped memory for tpu_custom_call.1']
    #allocation4 [shape = 's32[1]{0}', space=sflag, size = 0x4, scoped, tag = 'scoped memory for tpu_custom_call.1']
    #allocation5 [shape = 'u8[512]{0}', space=vmem, size = 0x400, scoped, tag = 'output window, operand 0, single buffered']
    %7 = vsyncpa [#allocation3], 0
    %8 = vsyncpa [#allocation4], 0
    // Predicated region
    $region2: #{tpu_custom_call.1} parent=1 // pred_check
      _
    $region3: #{tpu_custom_call.1} parent=1 // pred_check_branch
      %10 = sbr.rel (0) target = $region5
    $region4: #{tpu_custom_call.1} parent=1 // pred_region
      %s12 = ssub.s32 512, 512
      %13 = vsyncadd [#allocation3], %s12
      %s14 = sshll.u32 [#allocation2], 4
      %s15 = int_to_ptr.vmem [resolvable:$true] %s14
      %20 = dma.hbm_to_vmem [thread:$0]  %s0, 512, %s15, [#allocation3], 256, 256, 16
    $region5: #{tpu_custom_call.1} parent=1 // pred_fallthru
      _
    // Predicated region
    $region6: #{tpu_custom_call.1} parent=1 // pred_check
      _
    $region7: #{tpu_custom_call.1} parent=1 // pred_check_branch
      %22 = sbr.rel (0) target = $region9
    $region8: #{tpu_custom_call.1} parent=1 // pred_region
      _
    $region9: #{tpu_custom_call.1} parent=1 // pred_fallthru
      _
    // Predicated region
    $region10: #{tpu_custom_call.1} parent=1 // pred_check
      _
    $region11: #{tpu_custom_call.1} parent=1 // pred_check_branch
      %24 = sbr.rel (0) target = $region13
    $region12: #{tpu_custom_call.1} parent=1 // pred_region
      %25 = dma.done [#allocation3], 512
    $region13: #{tpu_custom_call.1} parent=1 // pred_fallthru
      _
    %v26 = vld [vmem:[#allocation2] sm:$0xff]
    %v27 = vld [vmem:[#allocation2 + $0x8] sm:$0xff]
    %v28 = vld [vmem:[#allocation2 + $0x10] sm:$0xf]
    %v29 = vld [vmem:[#allocation2 + $0x18] sm:$0xf]
    %v30 = vld [vmem:[%s1] sm:$0xff]
    %v31 = vld [vmem:[%s1 + $0x8] sm:$0xf]
    %vm32 = vcmask 261120
    %v33 = vsel %vm32, %v27, -inf
    %v34 = vmax.f32 %v26, %v33
    %35 = vmax.xlane.f32.xlu0 %v34
    %v36 = vpop.xlane.xlu0 %35
    %vm37 = vcmask 1043456
    %v38 = vsel %vm37, %v28, -inf
    %vm39 = vcmask 257024
    %v40 = vsel %vm39, %v29, -inf
    %v41 = vmax.f32 %v38, %v40
    %42 = vmax.xlane.f32.xlu0 %v41
    %v43 = vpop.xlane.xlu0 %42
    %v44 = vsub.f32 %v26, %v36
    %v45 = vsub.f32 %v27, %v36
    %v46 = vsub.f32 %v28, %v43
    %v47 = vsub.f32 %v29, %v43
    %v48 = vmul.f32 %v44, 1.442695
    %v49 = vpow.pop %v48
    %v50 = vmul.f32 %v45, 1.442695
    %v51 = vpow.pop %v50
    %v52 = vmul.f32 %v46, 1.442695
    %v53 = vpow.pop %v52
    %v54 = vmul.f32 %v47, 1.442695
    %v55 = vpow.pop %v54
    %v56 = vsel %vm32, %v51, 0.0
    %v57 = vadd.f32 %v49, %v56
    %58 = vadd.xlane.f32.xlu0 %v57
    %v59 = vpop.xlane.xlu0 %58
    %v60 = vsel %vm37, %v53, 0.0
    %v61 = vsel %vm39, %v55, 0.0
    %v62 = vadd.f32 %v60, %v61
    %63 = vadd.xlane.f32.xlu0 %v62
    %v64 = vpop.xlane.xlu0 %63
    %v65 = vlog2.pop %v59
    %v66 = vmul.f32 %v65, 0.6931472
    %v67 = vlog2.pop %v64
    %v68 = vmul.f32 %v67, 0.6931472
    %v69 = vlaneseq
    %v70 = vand.u32 %v69, 127
    %v71 = vadd.s32 %v70, 128
    %72 = vset.pattern.permute.xlu0 0
    %73 = vperm.xlu0 %72, %v30
    %v74 = vpop.permute.xlu0 %73
    %75 = vset.pattern.permute.xlu0 0
    %76 = vperm.xlu0 %75, %v31
    %v77 = vpop.permute.xlu0 %76
    %vm78 = vcmp.eq.s32.totalorder %v70, %v74
    %vm79 = vcmp.eq.s32.totalorder %v71, %v74
    %vm80 = vcmp.eq.s32.totalorder %v70, %v77
    %vm81 = vcmp.eq.s32.totalorder %v71, %v77
    %v82 = vsel %vm78, %v44, 0.0
    %v83 = vsel %vm79, %v45, 0.0
    %v84 = vsel %vm80, %v46, 0.0
    %v85 = vsel %vm81, %v47, 0.0
    %v86 = vsel %vm32, %v83, 0.0
    %v87 = vadd.f32 %v82, %v86
    %88 = vadd.xlane.f32.xlu0 %v87
    %v89 = vpop.xlane.xlu0 %88
    %v90 = vsel %vm37, %v84, 0.0
    %v91 = vsel %vm39, %v85, 0.0
    %v92 = vadd.f32 %v90, %v91
    %93 = vadd.xlane.f32.xlu0 %v92
    %v94 = vpop.xlane.xlu0 %93
    %v95 = vsel %vm32, %v45, 0.0
    %v96 = vadd.f32 %v44, %v95
    %97 = vadd.xlane.f32.xlu0 %v96
    %v98 = vpop.xlane.xlu0 %97
    %v99 = vsel %vm37, %v46, 0.0
    %v100 = vsel %vm39, %v47, 0.0
    %v101 = vadd.f32 %v99, %v100
    %102 = vadd.xlane.f32.xlu0 %v101
    %v103 = vpop.xlane.xlu0 %102
    %v104 = vsub.f32 %v89, %v66
    %v105 = vsub.f32 %v94, %v68
    %v106 = vmul.f32 %v104, -0.9
    %v107 = vmul.f32 %v105, -0.9
    %v108 = vmul.f32 %v66, 160.0
    %v109 = vmul.f32 %v68, 160.0
    %v110 = vsub.f32 %v98, %v108
    %v111 = vsub.f32 %v103, %v109
    %v112 = vmul.f32 %v110, 0.000625
    %v113 = vmul.f32 %v111, 0.000625
    %v114 = vsub.f32 %v106, %v112
    %v115 = vsub.f32 %v107, %v113
    %vm116 = vcmask 7168
    %v117 = vsel %vm116, %v114, 0.0
    %vm118 = vcmask 3072
    %v119 = vsel %vm118, %v115, 0.0
    %v120 = vadd.f32 %v117, %v119
    %121 = vadd.xlane.f32.xlu0 %v120
    %v122 = vpop.xlane.xlu0 %121
    %v123 = vrot.slane %v122, 4
    %v124 = vadd.f32 %v122, %v123
    %v125 = vrot.slane %v124, 2
    %v126 = vadd.f32 %v124, %v125
    %v127 = vrot.slane %v126, 1
    %v128 = vadd.f32 %v126, %v127
    %s129 = vtos %v128
    %v130 = vstv %s129
    %131 = vst [vmem:[#allocation5] sm:$0x1] %v130
    // Predicated region
    $region14: #{tpu_custom_call.1} parent=1 // pred_check
      _
    $region15: #{tpu_custom_call.1} parent=1 // pred_check_branch
      %133 = sbr.rel (0) target = $region17
    $region16: #{tpu_custom_call.1} parent=1 // pred_region
      %s135 = ssub.s32 16, 16
      %136 = vsyncadd [#allocation4], %s135
      %s138 = sshll.u32 [#allocation5], 4
      %s139 = int_to_ptr.vmem [resolvable:$true] %s138
      %141 = dma.vmem_to_hbm [thread:$0]  %s139, 16, %s2, [#allocation4]
    $region17: #{tpu_custom_call.1} parent=1 // pred_fallthru
      _
    // Predicated region
    $region18: #{tpu_custom_call.1} parent=1 // pred_check
      _
    $region19: #{tpu_custom_call.1} parent=1 // pred_check_branch
      %143 = sbr.rel (0) target = $region21
    $region20: #{tpu_custom_call.1} parent=1 // pred_region
      %144 = dma.done [#allocation4], 16
    $region21: #{tpu_custom_call.1} parent=1 // pred_fallthru
      _
    %145 = vsyncpa [#allocation3], 1
    %146 = vsyncpa [#allocation4], 1

</llo_original>
